<compile_context>
chip_gen: v5e
topology: v5e:2x2
jax: 0.10.0
libtpu: 0.0.40
codegen_flags: <defaults>
</compile_context>

<pallas_src>
import jax
import jax.numpy as jnp
import numpy as np
from jax import lax
from jax.experimental import pallas as pl
from jax.experimental.pallas import tpu as pltpu

_EPS = 1e-5


def _attention_kernel(x_ref, e_ref,
                      mxx_ref, mex_ref, mxe_ref, mee_ref,
                      ln1x_ref, ln1e_ref, ln2_ref, onehot_ref,
                      out_ref):
    """One grid step: a tile of Bt batch elements with the seq axis exposed.

    x_ref      : (Bt, S, I)    raw inputs
    e_ref      : (1, S, emb)   positional embedding (shared across batches)
    m??_ref    : blocks of M = scale * Wq^T @ Wk, split at the x|E boundary
    ln1x/ln1e  : (2, I)/(2, emb)  LayerNorm1 gamma;beta, split at x|E
    ln2_ref    : (2, I)        LayerNorm2 gamma;beta
    onehot_ref : (1, I)        one-hot selector of feature I-1
    out_ref    : (1, Bt)       attended_ln[:, -1] per batch (batch on lanes)
    """
    x = x_ref[...]                                   # (Bt, S, I)  f32
    e = e_ref[...]                                   # (1, S, emb)
    idim = x.shape[-1]
    edim = e.shape[-1]
    inv_d = 1.0 / float(idim + edim)

    g1x = ln1x_ref[0:1, :].reshape(1, 1, idim)
    b1x = ln1x_ref[1:2, :].reshape(1, 1, idim)
    g1e = ln1e_ref[0:1, :].reshape(1, 1, edim)
    b1e = ln1e_ref[1:2, :].reshape(1, 1, edim)
    g2 = ln2_ref[0:1, :]                             # (1, I)
    b2 = ln2_ref[1:2, :]

    # ---- LayerNorm1 over concat(x, E) without materialising the concat ----
    mean1 = (jnp.sum(x, axis=-1, keepdims=True)
             + jnp.sum(e, axis=-1, keepdims=True)) * inv_d       # (Bt, S, 1)
    cx = x - mean1                                               # (Bt, S, I)
    ce = e - mean1                                               # (Bt, S, emb)
    var1 = (jnp.sum(cx * cx, axis=-1, keepdims=True)
            + jnp.sum(ce * ce, axis=-1, keepdims=True)) * inv_d
    inv_std1 = lax.rsqrt(var1 + _EPS)                            # (Bt, S, 1)
    h_x = cx * inv_std1 * g1x + b1x                              # (Bt, S, I)
    h_e = ce * inv_std1 * g1e + b1e                              # (Bt, S, emb)

    # ---- attention: attn[b,s] = h0[b] @ M @ h[b,s], M = scale*Wq^T@Wk -----
    h0_x = h_x[:, 0, :]                                          # (Bt, I)
    h0_e = h_e[:, 0, :]                                          # (Bt, emb)
    qm_x = (jnp.dot(h0_x, mxx_ref[...], preferred_element_type=jnp.float32)
            + jnp.dot(h0_e, mex_ref[...], preferred_element_type=jnp.float32))
    qm_e = (jnp.dot(h0_x, mxe_ref[...], preferred_element_type=jnp.float32)
            + jnp.dot(h0_e, mee_ref[...], preferred_element_type=jnp.float32))
    attn = (jnp.sum(qm_x[:, None, :] * h_x, axis=-1, keepdims=True)
            + jnp.sum(qm_e[:, None, :] * h_e, axis=-1, keepdims=True))
    # attn : (Bt, S, 1)

    # ---- attended values + residual (values = x-part of the normed concat) -
    attended = jnp.sum(attn * h_x, axis=1) + h0_x                # (Bt, I)

    # ---- LayerNorm2 over input_dim ----
    mean2 = jnp.mean(attended, axis=-1, keepdims=True)
    var2 = jnp.mean(jnp.square(attended - mean2), axis=-1, keepdims=True)
    a_ln = (attended - mean2) * lax.rsqrt(var2 + _EPS) * g2 + b2  # (Bt, I)

    # Only feature idim-1 is consumed downstream; one tiny MXU contraction
    # against a resident one-hot puts batch on the lane axis (lane-dense
    # (1, Bt) store).
    out_ref[...] = lax.dot_general(
        onehot_ref[...], a_ln, (((1,), (1,)), ((), ())),
        preferred_element_type=jnp.float32)                      # (1, Bt)


def _round_up(a, m):
    return ((a + m - 1) // m) * m


def _cdiv(a, b):
    return -(-a // b)


def transformer_forecasting_cat(x, params, block_b=512):
    """Pallas implementation of TransformerForecasting_cat.forward.

    x: (B, S, input_dim) float32.  Returns (B,) float32, matching
    torch.squeeze(attended_values[:, :, -1]).
    """
    E = jnp.asarray(params["E"], jnp.float32)
    wq = jnp.asarray(params["Wq"], jnp.float32)
    wk = jnp.asarray(params["Wk"], jnp.float32)
    g1 = jnp.asarray(params["g1"], jnp.float32)
    b1 = jnp.asarray(params["b1"], jnp.float32)
    g2 = jnp.asarray(params["g2"], jnp.float32)
    b2 = jnp.asarray(params["b2"], jnp.float32)

    B, S, idim = x.shape
    edim = E.shape[1]
    d = idim + edim
    scale = float(d) ** -0.5

    # Fold the two bias-free projections into one bilinear form and split it
    # at the x|E feature boundary (no in-kernel concat / unaligned slices).
    m = scale * (wq.T @ wk)                                   # (d, d)
    mxx, mxe = m[:idim, :idim], m[:idim, idim:]
    mex, mee = m[idim:, :idim], m[idim:, idim:]

    ln1x = jnp.stack([g1[:idim], b1[:idim]])                  # (2, idim)
    ln1e = jnp.stack([g1[idim:], b1[idim:]])                  # (2, edim)
    ln2 = jnp.stack([g2, b2])                                 # (2, idim)
    onehot_last = jnp.zeros((1, idim), jnp.float32).at[0, idim - 1].set(1.0)

    # Batch tiling: a single chunk for small B; otherwise 128-aligned chunks
    # with n_chunks >= 2 so both v7x TensorCores get work via the "parallel"
    # grid axis.  Lane-dense output blocks require bt % 128 == 0 whenever
    # there is more than one chunk.
    if B <= min(block_b, 256):
        bt, n_chunks = B, 1
    else:
        n_target = max(2, _cdiv(B, block_b))
        bt = _round_up(_cdiv(B, n_target), 128)
        n_chunks = _cdiv(B, bt)
    b_pad = n_chunks * bt

    xf = x.astype(jnp.float32)
    if b_pad != B:
        xf = jnp.pad(xf, ((0, b_pad - B), (0, 0), (0, 0)))

    e3 = E[None]                                              # (1, S, edim)

    grid_spec = pltpu.PrefetchScalarGridSpec(
        num_scalar_prefetch=0,
        grid=(n_chunks,),
        in_specs=[
            pl.BlockSpec((bt, S, idim), lambda c: (c, 0, 0)),   # x chunk
            pl.BlockSpec((1, S, edim), lambda c: (0, 0, 0)),    # E (resident)
            pl.BlockSpec((idim, idim), lambda c: (0, 0)),       # Mxx
            pl.BlockSpec((edim, idim), lambda c: (0, 0)),       # Mex
            pl.BlockSpec((idim, edim), lambda c: (0, 0)),       # Mxe
            pl.BlockSpec((edim, edim), lambda c: (0, 0)),       # Mee
            pl.BlockSpec((2, idim), lambda c: (0, 0)),          # ln1 (x part)
            pl.BlockSpec((2, edim), lambda c: (0, 0)),          # ln1 (E part)
            pl.BlockSpec((2, idim), lambda c: (0, 0)),          # ln2
            pl.BlockSpec((1, idim), lambda c: (0, 0)),          # one-hot last
        ],
        out_specs=pl.BlockSpec((1, bt), lambda c: (0, c)),
    )

    # VMEM sizing: x double-buffer (lane-padded to 128) plus headroom for the
    # in-kernel intermediates; clamped to a range safe on v5e/v6e/v7x.
    lane_row_bytes = 128 * 4
    est = 12 * bt * S * lane_row_bytes
    vmem_limit = int(min(96 * 2**20, max(32 * 2**20, est)))

    out = pl.pallas_call(
        _attention_kernel,
        out_shape=jax.ShapeDtypeStruct((1, b_pad), jnp.float32),
        grid_spec=grid_spec,
        compiler_params=pltpu.CompilerParams(
            dimension_semantics=("parallel",),
            vmem_limit_bytes=vmem_limit),
    )(xf, e3, mxx, mex, mxe, mee, ln1x, ln1e, ln2, onehot_last)

    return out.reshape(b_pad)[:B]


def _reference_jax(x, params):
    """Pure-JAX reference mirroring the PyTorch forward, for verification."""
    E, wq, wk, g1, b1, g2, b2 = (params[k] for k in
                                 ("E", "Wq", "Wk", "g1", "b1", "g2", "b2"))
    B, S, idim = x.shape
    d = idim + E.shape[1]
    xe = jnp.concatenate(
        [x, jnp.broadcast_to(E[None], (B, S, E.shape[1]))], axis=-1)
    mu = xe.mean(-1, keepdims=True)
    var = ((xe - mu) ** 2).mean(-1, keepdims=True)
    h = (xe - mu) / jnp.sqrt(var + _EPS) * g1 + b1
    scale = d ** (-0.5)
    q = h[:, 0:1, :] @ wq.T
    k = h @ wk.T
    attn = scale * (q @ jnp.swapaxes(k, -2, -1))
    values = h[:, :, :idim]
    att = attn @ values + values[:, 0:1, :]
    mu2 = att.mean(-1, keepdims=True)
    var2 = ((att - mu2) ** 2).mean(-1, keepdims=True)
    a_ln = (att - mu2) / jnp.sqrt(var2 + _EPS) * g2 + b2
    return jnp.squeeze(a_ln[:, :, -1])


def make_params(key, seq_len, input_dim, emb_dim, proj_dim=None):
    if proj_dim is None:
        proj_dim = seq_len
    d = input_dim + emb_dim
    k_e, k_q, k_k = jax.random.split(key, 3)
    bound = 1.0 / np.sqrt(d)
    return {
        "E": jax.random.normal(k_e, (seq_len, emb_dim), jnp.float32),
        "Wq": jax.random.uniform(k_q, (proj_dim, d), jnp.float32,
                                 -bound, bound),
        "Wk": jax.random.uniform(k_k, (proj_dim, d), jnp.float32,
                                 -bound, bound),
        "g1": jnp.ones((d,), jnp.float32),
        "b1": jnp.zeros((d,), jnp.float32),
        "g2": jnp.ones((input_dim,), jnp.float32),
        "b2": jnp.zeros((input_dim,), jnp.float32),
    }


if __name__ == "__main__":
    # small shapes consistent with the module: (batch, seq_len, input_dim)
    B, S, INPUT_DIM, EMB_DIM = 2, 8, 24, 8

    key = jax.random.PRNGKey(0)
    k_x, k_p = jax.random.split(key)
    x = jax.random.normal(k_x, (B, S, INPUT_DIM), jnp.float32)
    params = make_params(k_p, S, INPUT_DIM, EMB_DIM)

    out = transformer_forecasting_cat(x, params)
    out = jax.block_until_ready(out)

    ref = jax.block_until_ready(_reference_jax(x, params))
    np.testing.assert_allclose(np.asarray(out), np.asarray(ref),
                               rtol=1e-4, atol=1e-4)

    assert out.shape == (B,)
    print("KERNEL_OK")
</pallas_src>

<mosaic_0001>
module attributes {stable_mosaic.version = 11 : i64} {
  func.func @_attention_kernel(%arg0: i32, %arg1: memref<2x8x24xf32, #tpu.memory_space<vmem>>, %arg2: memref<1x8x8xf32, #tpu.memory_space<vmem>>, %arg3: memref<24x24xf32, #tpu.memory_space<vmem>>, %arg4: memref<8x24xf32, #tpu.memory_space<vmem>>, %arg5: memref<24x8xf32, #tpu.memory_space<vmem>>, %arg6: memref<8x8xf32, #tpu.memory_space<vmem>>, %arg7: memref<2x24xf32, #tpu.memory_space<vmem>>, %arg8: memref<2x8xf32, #tpu.memory_space<vmem>>, %arg9: memref<2x24xf32, #tpu.memory_space<vmem>>, %arg10: memref<1x24xf32, #tpu.memory_space<vmem>>, %arg11: memref<1x2xf32, #tpu.memory_space<vmem>>) attributes {dimension_semantics = [#tpu.dimension_semantics<parallel>], iteration_bounds = array<i64: 1>, scalar_prefetch = 0 : i64, scratch_operands = 0 : i64, tpu.core_type = #tpu.core_type<tc>, window_params = [{transform_indices = @transform_0, window_bounds = array<i64: 2, 8, 24>}, {pipeline_mode = #tpu.pipeline_mode<synchronous>, transform_indices = @transform_1, window_bounds = array<i64: 1, 8, 8>}, {pipeline_mode = #tpu.pipeline_mode<synchronous>, transform_indices = @transform_2, window_bounds = array<i64: 24, 24>}, {pipeline_mode = #tpu.pipeline_mode<synchronous>, transform_indices = @transform_3, window_bounds = array<i64: 8, 24>}, {pipeline_mode = #tpu.pipeline_mode<synchronous>, transform_indices = @transform_4, window_bounds = array<i64: 24, 8>}, {pipeline_mode = #tpu.pipeline_mode<synchronous>, transform_indices = @transform_5, window_bounds = array<i64: 8, 8>}, {pipeline_mode = #tpu.pipeline_mode<synchronous>, transform_indices = @transform_6, window_bounds = array<i64: 2, 24>}, {pipeline_mode = #tpu.pipeline_mode<synchronous>, transform_indices = @transform_7, window_bounds = array<i64: 2, 8>}, {pipeline_mode = #tpu.pipeline_mode<synchronous>, transform_indices = @transform_8, window_bounds = array<i64: 2, 24>}, {pipeline_mode = #tpu.pipeline_mode<synchronous>, transform_indices = @transform_9, window_bounds = array<i64: 1, 24>}, {transform_indices = @transform_10, window_bounds = array<i64: 1, 2>}]} {
    %c0 = arith.constant 0 : index
    %c0_0 = arith.constant 0 : index
    %c0_1 = arith.constant 0 : index
    %0 = vector.load %arg1[%c0, %c0_0, %c0_1] : memref<2x8x24xf32, #tpu.memory_space<vmem>>, vector<2x8x24xf32>
    %c0_2 = arith.constant 0 : index
    %c0_3 = arith.constant 0 : index
    %c0_4 = arith.constant 0 : index
    %1 = vector.load %arg2[%c0_2, %c0_3, %c0_4] : memref<1x8x8xf32, #tpu.memory_space<vmem>>, vector<1x8x8xf32>
    %c0_5 = arith.constant 0 : index
    %c0_6 = arith.constant 0 : index
    %2 = vector.load %arg7[%c0_5, %c0_6] : memref<2x24xf32, #tpu.memory_space<vmem>>, vector<1x24xf32>
    %3 = vector.shape_cast %2 : vector<1x24xf32> to vector<1x1x24xf32>
    %c1 = arith.constant 1 : index
    %c0_7 = arith.constant 0 : index
    %4 = vector.load %arg7[%c1, %c0_7] : memref<2x24xf32, #tpu.memory_space<vmem>>, vector<1x24xf32>
    %5 = vector.shape_cast %4 : vector<1x24xf32> to vector<1x1x24xf32>
    %c0_8 = arith.constant 0 : index
    %c0_9 = arith.constant 0 : index
    %6 = vector.load %arg8[%c0_8, %c0_9] : memref<2x8xf32, #tpu.memory_space<vmem>>, vector<1x8xf32>
    %7 = vector.shape_cast %6 : vector<1x8xf32> to vector<1x1x8xf32>
    %c1_10 = arith.constant 1 : index
    %c0_11 = arith.constant 0 : index
    %8 = vector.load %arg8[%c1_10, %c0_11] : memref<2x8xf32, #tpu.memory_space<vmem>>, vector<1x8xf32>
    %9 = vector.shape_cast %8 : vector<1x8xf32> to vector<1x1x8xf32>
    %c0_12 = arith.constant 0 : index
    %c0_13 = arith.constant 0 : index
    %10 = vector.load %arg9[%c0_12, %c0_13] : memref<2x24xf32, #tpu.memory_space<vmem>>, vector<1x24xf32>
    %c1_14 = arith.constant 1 : index
    %c0_15 = arith.constant 0 : index
    %11 = vector.load %arg9[%c1_14, %c0_15] : memref<2x24xf32, #tpu.memory_space<vmem>>, vector<1x24xf32>
    %cst = arith.constant dense<0.000000e+00> : vector<2x8xf32>
    %12 = vector.multi_reduction <add>, %0, %cst [2] : vector<2x8x24xf32> to vector<2x8xf32>
    %13 = vector.shape_cast %12 : vector<2x8xf32> to vector<2x8x1xf32>
    %cst_16 = arith.constant dense<0.000000e+00> : vector<1x8xf32>
    %14 = vector.multi_reduction <add>, %1, %cst_16 [2] : vector<1x8x8xf32> to vector<1x8xf32>
    %15 = vector.shape_cast %14 : vector<1x8xf32> to vector<1x8x1xf32>
    %16 = vector.broadcast %15 : vector<1x8x1xf32> to vector<2x8x1xf32>
    %17 = arith.addf %13, %16 : vector<2x8x1xf32>
    %cst_17 = arith.constant 3.125000e-02 : f32
    %18 = vector.broadcast %cst_17 : f32 to vector<2x8x1xf32>
    %19 = arith.mulf %17, %18 : vector<2x8x1xf32>
    %20 = vector.broadcast %19 : vector<2x8x1xf32> to vector<2x8x24xf32>
    %21 = arith.subf %0, %20 : vector<2x8x24xf32>
    %22 = vector.broadcast %1 : vector<1x8x8xf32> to vector<2x8x8xf32>
    %23 = vector.broadcast %19 : vector<2x8x1xf32> to vector<2x8x8xf32>
    %24 = arith.subf %22, %23 : vector<2x8x8xf32>
    %25 = arith.mulf %21, %21 : vector<2x8x24xf32>
    %cst_18 = arith.constant dense<0.000000e+00> : vector<2x8xf32>
    %26 = vector.multi_reduction <add>, %25, %cst_18 [2] : vector<2x8x24xf32> to vector<2x8xf32>
    %27 = vector.shape_cast %26 : vector<2x8xf32> to vector<2x8x1xf32>
    %28 = arith.mulf %24, %24 : vector<2x8x8xf32>
    %cst_19 = arith.constant dense<0.000000e+00> : vector<2x8xf32>
    %29 = vector.multi_reduction <add>, %28, %cst_19 [2] : vector<2x8x8xf32> to vector<2x8xf32>
    %30 = vector.shape_cast %29 : vector<2x8xf32> to vector<2x8x1xf32>
    %31 = arith.addf %27, %30 : vector<2x8x1xf32>
    %cst_20 = arith.constant 3.125000e-02 : f32
    %32 = vector.broadcast %cst_20 : f32 to vector<2x8x1xf32>
    %33 = arith.mulf %31, %32 : vector<2x8x1xf32>
    %cst_21 = arith.constant 9.99999974E-6 : f32
    %34 = vector.broadcast %cst_21 : f32 to vector<2x8x1xf32>
    %35 = arith.addf %33, %34 : vector<2x8x1xf32>
    %36 = math.rsqrt %35 : vector<2x8x1xf32>
    %37 = vector.broadcast %36 : vector<2x8x1xf32> to vector<2x8x24xf32>
    %38 = arith.mulf %21, %37 : vector<2x8x24xf32>
    %39 = vector.broadcast %3 : vector<1x1x24xf32> to vector<2x8x24xf32>
    %40 = arith.mulf %38, %39 : vector<2x8x24xf32>
    %41 = vector.broadcast %5 : vector<1x1x24xf32> to vector<2x8x24xf32>
    %42 = arith.addf %40, %41 : vector<2x8x24xf32>
    %43 = vector.broadcast %36 : vector<2x8x1xf32> to vector<2x8x8xf32>
    %44 = arith.mulf %24, %43 : vector<2x8x8xf32>
    %45 = vector.broadcast %7 : vector<1x1x8xf32> to vector<2x8x8xf32>
    %46 = arith.mulf %44, %45 : vector<2x8x8xf32>
    %47 = vector.broadcast %9 : vector<1x1x8xf32> to vector<2x8x8xf32>
    %48 = arith.addf %46, %47 : vector<2x8x8xf32>
    %49 = vector.extract_strided_slice %42 {offsets = [0, 0, 0], sizes = [2, 1, 24], strides = [1, 1, 1]} : vector<2x8x24xf32> to vector<2x1x24xf32>
    %50 = vector.shape_cast %49 : vector<2x1x24xf32> to vector<2x24xf32>
    %51 = vector.extract_strided_slice %48 {offsets = [0, 0, 0], sizes = [2, 1, 8], strides = [1, 1, 1]} : vector<2x8x8xf32> to vector<2x1x8xf32>
    %52 = vector.shape_cast %51 : vector<2x1x8xf32> to vector<2x8xf32>
    %c0_22 = arith.constant 0 : index
    %c0_23 = arith.constant 0 : index
    %53 = vector.load %arg3[%c0_22, %c0_23] : memref<24x24xf32, #tpu.memory_space<vmem>>, vector<24x24xf32>
    %cst_24 = arith.constant dense<0.000000e+00> : vector<2x24xf32>
    %54 = tpu.matmul %50, %53, %cst_24 {dimension_numbers = #tpu.dot_dimension_numbers<[1], [0], [0], [1], [0, 0, 1, 1], [], []>} : vector<2x24xf32>, vector<24x24xf32>, vector<2x24xf32> -> vector<2x24xf32>
    %c0_25 = arith.constant 0 : index
    %c0_26 = arith.constant 0 : index
    %55 = vector.load %arg4[%c0_25, %c0_26] : memref<8x24xf32, #tpu.memory_space<vmem>>, vector<8x24xf32>
    %cst_27 = arith.constant dense<0.000000e+00> : vector<2x24xf32>
    %56 = tpu.matmul %52, %55, %cst_27 {dimension_numbers = #tpu.dot_dimension_numbers<[1], [0], [0], [1], [0, 0, 1, 1], [], []>} : vector<2x8xf32>, vector<8x24xf32>, vector<2x24xf32> -> vector<2x24xf32>
    %57 = arith.addf %54, %56 : vector<2x24xf32>
    %c0_28 = arith.constant 0 : index
    %c0_29 = arith.constant 0 : index
    %58 = vector.load %arg5[%c0_28, %c0_29] : memref<24x8xf32, #tpu.memory_space<vmem>>, vector<24x8xf32>
    %cst_30 = arith.constant dense<0.000000e+00> : vector<2x8xf32>
    %59 = tpu.matmul %50, %58, %cst_30 {dimension_numbers = #tpu.dot_dimension_numbers<[1], [0], [0], [1], [0, 0, 1, 1], [], []>} : vector<2x24xf32>, vector<24x8xf32>, vector<2x8xf32> -> vector<2x8xf32>
    %c0_31 = arith.constant 0 : index
    %c0_32 = arith.constant 0 : index
    %60 = vector.load %arg6[%c0_31, %c0_32] : memref<8x8xf32, #tpu.memory_space<vmem>>, vector<8x8xf32>
    %cst_33 = arith.constant dense<0.000000e+00> : vector<2x8xf32>
    %61 = tpu.matmul %52, %60, %cst_33 {dimension_numbers = #tpu.dot_dimension_numbers<[1], [0], [0], [1], [0, 0, 1, 1], [], []>} : vector<2x8xf32>, vector<8x8xf32>, vector<2x8xf32> -> vector<2x8xf32>
    %62 = arith.addf %59, %61 : vector<2x8xf32>
    %63 = vector.shape_cast %57 : vector<2x24xf32> to vector<2x1x24xf32>
    %64 = vector.broadcast %63 : vector<2x1x24xf32> to vector<2x8x24xf32>
    %65 = arith.mulf %64, %42 : vector<2x8x24xf32>
    %cst_34 = arith.constant dense<0.000000e+00> : vector<2x8xf32>
    %66 = vector.multi_reduction <add>, %65, %cst_34 [2] : vector<2x8x24xf32> to vector<2x8xf32>
    %67 = vector.shape_cast %66 : vector<2x8xf32> to vector<2x8x1xf32>
    %68 = vector.shape_cast %62 : vector<2x8xf32> to vector<2x1x8xf32>
    %69 = vector.broadcast %68 : vector<2x1x8xf32> to vector<2x8x8xf32>
    %70 = arith.mulf %69, %48 : vector<2x8x8xf32>
    %cst_35 = arith.constant dense<0.000000e+00> : vector<2x8xf32>
    %71 = vector.multi_reduction <add>, %70, %cst_35 [2] : vector<2x8x8xf32> to vector<2x8xf32>
    %72 = vector.shape_cast %71 : vector<2x8xf32> to vector<2x8x1xf32>
    %73 = arith.addf %67, %72 : vector<2x8x1xf32>
    %74 = vector.broadcast %73 : vector<2x8x1xf32> to vector<2x8x24xf32>
    %75 = arith.mulf %74, %42 : vector<2x8x24xf32>
    %cst_36 = arith.constant dense<0.000000e+00> : vector<2x24xf32>
    %76 = vector.multi_reduction <add>, %75, %cst_36 [1] : vector<2x8x24xf32> to vector<2x24xf32>
    %77 = arith.addf %76, %50 : vector<2x24xf32>
    %cst_37 = arith.constant dense<0.000000e+00> : vector<2xf32>
    %78 = vector.multi_reduction <add>, %77, %cst_37 [1] : vector<2x24xf32> to vector<2xf32>
    %79 = vector.shape_cast %78 : vector<2xf32> to vector<2x1xf32>
    %cst_38 = arith.constant 2.400000e+01 : f32
    %80 = vector.broadcast %cst_38 : f32 to vector<2x1xf32>
    %81 = arith.divf %79, %80 : vector<2x1xf32>
    %82 = vector.broadcast %81 : vector<2x1xf32> to vector<2x24xf32>
    %83 = arith.subf %77, %82 : vector<2x24xf32>
    %84 = arith.mulf %83, %83 : vector<2x24xf32>
    %cst_39 = arith.constant dense<0.000000e+00> : vector<2xf32>
    %85 = vector.multi_reduction <add>, %84, %cst_39 [1] : vector<2x24xf32> to vector<2xf32>
    %86 = vector.shape_cast %85 : vector<2xf32> to vector<2x1xf32>
    %cst_40 = arith.constant 2.400000e+01 : f32
    %87 = vector.broadcast %cst_40 : f32 to vector<2x1xf32>
    %88 = arith.divf %86, %87 : vector<2x1xf32>
    %89 = vector.broadcast %81 : vector<2x1xf32> to vector<2x24xf32>
    %90 = arith.subf %77, %89 : vector<2x24xf32>
    %cst_41 = arith.constant 9.99999974E-6 : f32
    %91 = vector.broadcast %cst_41 : f32 to vector<2x1xf32>
    %92 = arith.addf %88, %91 : vector<2x1xf32>
    %93 = math.rsqrt %92 : vector<2x1xf32>
    %94 = vector.broadcast %93 : vector<2x1xf32> to vector<2x24xf32>
    %95 = arith.mulf %90, %94 : vector<2x24xf32>
    %96 = vector.broadcast %10 : vector<1x24xf32> to vector<2x24xf32>
    %97 = arith.mulf %95, %96 : vector<2x24xf32>
    %98 = vector.broadcast %11 : vector<1x24xf32> to vector<2x24xf32>
    %99 = arith.addf %97, %98 : vector<2x24xf32>
    %c0_42 = arith.constant 0 : index
    %c0_43 = arith.constant 0 : index
    %100 = vector.load %arg10[%c0_42, %c0_43] : memref<1x24xf32, #tpu.memory_space<vmem>>, vector<1x24xf32>
    %cst_44 = arith.constant dense<0.000000e+00> : vector<1x2xf32>
    %101 = tpu.matmul %100, %99, %cst_44 {dimension_numbers = #tpu.dot_dimension_numbers<[1], [1], [0], [0], [0, 0, 1, 0], [], []>} : vector<1x24xf32>, vector<2x24xf32>, vector<1x2xf32> -> vector<1x2xf32>
    %c0_45 = arith.constant 0 : index
    %c0_46 = arith.constant 0 : index
    %102 = vector.load %arg11[%c0_45, %c0_46] : memref<1x2xf32, #tpu.memory_space<vmem>>, vector<1x2xf32>
    tpu.vector_store %arg11[%c0_45, %c0_46], %101 {strides = array<i32>} : memref<1x2xf32, #tpu.memory_space<vmem>>, vector<1x2xf32>,
    return
  }
  func.func @transform_0(%arg0: i32) -> (i32, i32, i32) {
    %c0_i32 = arith.constant 0 : i32
    %c0_i32_0 = arith.constant 0 : i32
    %c0_i32_1 = arith.constant 0 : i32
    return %arg0, %c0_i32, %c0_i32_0 : i32, i32, i32
  }
  func.func @transform_1(%arg0: i32) -> (i32, i32, i32) {
    %c0_i32 = arith.constant 0 : i32
    %c0_i32_0 = arith.constant 0 : i32
    %c0_i32_1 = arith.constant 0 : i32
    %c0_i32_2 = arith.constant 0 : i32
    return %c0_i32, %c0_i32_0, %c0_i32_1 : i32, i32, i32
  }
  func.func @transform_2(%arg0: i32) -> (i32, i32) {
    %c0_i32 = arith.constant 0 : i32
    %c0_i32_0 = arith.constant 0 : i32
    %c0_i32_1 = arith.constant 0 : i32
    return %c0_i32, %c0_i32_0 : i32, i32
  }
  func.func @transform_3(%arg0: i32) -> (i32, i32) {
    %c0_i32 = arith.constant 0 : i32
    %c0_i32_0 = arith.constant 0 : i32
    %c0_i32_1 = arith.constant 0 : i32
    return %c0_i32, %c0_i32_0 : i32, i32
  }
  func.func @transform_4(%arg0: i32) -> (i32, i32) {
    %c0_i32 = arith.constant 0 : i32
    %c0_i32_0 = arith.constant 0 : i32
    %c0_i32_1 = arith.constant 0 : i32
    return %c0_i32, %c0_i32_0 : i32, i32
  }
  func.func @transform_5(%arg0: i32) -> (i32, i32) {
    %c0_i32 = arith.constant 0 : i32
    %c0_i32_0 = arith.constant 0 : i32
    %c0_i32_1 = arith.constant 0 : i32
    return %c0_i32, %c0_i32_0 : i32, i32
  }
  func.func @transform_6(%arg0: i32) -> (i32, i32) {
    %c0_i32 = arith.constant 0 : i32
    %c0_i32_0 = arith.constant 0 : i32
    %c0_i32_1 = arith.constant 0 : i32
    return %c0_i32, %c0_i32_0 : i32, i32
  }
  func.func @transform_7(%arg0: i32) -> (i32, i32) {
    %c0_i32 = arith.constant 0 : i32
    %c0_i32_0 = arith.constant 0 : i32
    %c0_i32_1 = arith.constant 0 : i32
    return %c0_i32, %c0_i32_0 : i32, i32
  }
  func.func @transform_8(%arg0: i32) -> (i32, i32) {
    %c0_i32 = arith.constant 0 : i32
    %c0_i32_0 = arith.constant 0 : i32
    %c0_i32_1 = arith.constant 0 : i32
    return %c0_i32, %c0_i32_0 : i32, i32
  }
  func.func @transform_9(%arg0: i32) -> (i32, i32) {
    %c0_i32 = arith.constant 0 : i32
    %c0_i32_0 = arith.constant 0 : i32
    %c0_i32_1 = arith.constant 0 : i32
    return %c0_i32, %c0_i32_0 : i32, i32
  }
  func.func @transform_10(%arg0: i32) -> (i32, i32) {
    %c0_i32 = arith.constant 0 : i32
    %c0_i32_0 = arith.constant 0 : i32
    return %c0_i32, %arg0 : i32, i32
  }
}

</mosaic_0001>

<llo_original>
// kernel: tpu_custom_call.1
$region0: #{tpu_custom_call.1}
  #allocation0 [shape = 'u32[]', space=smem, size = 0x4, offset = 0x4, fixed_abs, tag = 'smem constant byte address 0x4 - core index']
  #allocation1 [shape = 'u32[72,128]{1,0:T(1,128)}', space=vmem, size = 0x9000, scoped, tag = 'internal scratch']
  %s0 = inlined_call_operand.hbm [shape: f32[2,8,24], index: 0, kind: input, shape index: {}]
  %s1 = inlined_call_operand.vmem [shape: f32[1,8,8], index: 1, kind: input, shape index: {}]
  %s2 = inlined_call_operand.vmem [shape: f32[24,24], index: 2, kind: input, shape index: {}]
  %s3 = inlined_call_operand.hbm [shape: f32[8,24], index: 3, kind: input, shape index: {}]
  %s4 = inlined_call_operand.vmem [shape: f32[24,8], index: 4, kind: input, shape index: {}]
  %s5 = inlined_call_operand.hbm [shape: f32[8,8], index: 5, kind: input, shape index: {}]
  %s6 = inlined_call_operand.vmem [shape: f32[2,24], index: 6, kind: input, shape index: {}]
  %s7 = inlined_call_operand.vmem [shape: f32[2,8], index: 7, kind: input, shape index: {}]
  %s8 = inlined_call_operand.vmem [shape: f32[2,24], index: 8, kind: input, shape index: {}]
  %s9 = inlined_call_operand.vmem [shape: f32[1,24], index: 9, kind: input, shape index: {}]
  %s10 = inlined_call_operand.hbm [shape: f32[1,2], index: 10, kind: output, shape index: {}]
  %s11 = sld [smem:[#allocation0]]
  $region62: #{tpu_custom_call.1} parent=0
    _
  %s13 = ssub.s32 1, %s11
  %s14 = scalar_select 0, %s13, %s11
  $region1: #{tpu_custom_call.1} parent=0
    #allocation2 [shape = 'u8[8192]{0}', space=vmem, size = 0x2000, scoped, tag = 'input window, operand 0, single buffered']
    #allocation3 [shape = 's32[1]{0}', space=sflag, size = 0x4, scoped, tag = 'scoped memory for tpu_custom_call.1']
    #allocation4 [shape = 's32[1]{0}', space=sflag, size = 0x4, scoped, tag = 'scoped memory for tpu_custom_call.1']
    #allocation5 [shape = 'u8[4096]{0}', space=vmem, size = 0x1000, scoped, tag = 'input window, operand 3, single buffered']
    #allocation6 [shape = 's32[1]{0}', space=sflag, size = 0x4, scoped, tag = 'scoped memory for tpu_custom_call.1']
    #allocation7 [shape = 'u8[4096]{0}', space=vmem, size = 0x1000, scoped, tag = 'input window, operand 5, single buffered']
    #allocation8 [shape = 'u8[512]{0}', space=vmem, size = 0x400, scoped, tag = 'output window, operand 0, single buffered']
    %15 = vsyncpa [#allocation3], 0
    %16 = vsyncpa [#allocation6], 0
    %17 = vsyncpa [#allocation4], 0
    // Predicated region
    $region2: #{tpu_custom_call.1} parent=1 // pred_check
      _
    $region3: #{tpu_custom_call.1} parent=1 // pred_check_branch
      %19 = sbr.rel (0) target = $region5
    $region4: #{tpu_custom_call.1} parent=1 // pred_region
      %21 = vsyncadd [#allocation3], 0
      %s22 = sshll.u32 %s0, 4
      %s23 = int_to_ptr.hbm [resolvable:$true] %s22
      %s24 = sshll.u32 [#allocation2], 4
      %s25 = int_to_ptr.vmem [resolvable:$true] %s24
      %30 = dma.hbm_to_vmem [thread:$0]  %s23, 256, %s25, [#allocation3], 128, 128, 8
    $region5: #{tpu_custom_call.1} parent=1 // pred_fallthru
      _
    // Predicated region
    $region6: #{tpu_custom_call.1} parent=1 // pred_check
      _
    $region7: #{tpu_custom_call.1} parent=1 // pred_check_branch
      %32 = sbr.rel (0) target = $region9
    $region8: #{tpu_custom_call.1} parent=1 // pred_region
      _
    $region9: #{tpu_custom_call.1} parent=1 // pred_fallthru
      _
    // Predicated region
    $region10: #{tpu_custom_call.1} parent=1 // pred_check
      _
    $region11: #{tpu_custom_call.1} parent=1 // pred_check_branch
      %34 = sbr.rel (0) target = $region13
    $region12: #{tpu_custom_call.1} parent=1 // pred_region
      _
    $region13: #{tpu_custom_call.1} parent=1 // pred_fallthru
      _
    // Predicated region
    $region14: #{tpu_custom_call.1} parent=1 // pred_check
      _
    $region15: #{tpu_custom_call.1} parent=1 // pred_check_branch
      %36 = sbr.rel (0) target = $region17
    $region16: #{tpu_custom_call.1} parent=1 // pred_region
      %38 = vsyncadd [#allocation6], 0
      %s40 = sshll.u32 %s3, 4
      %s41 = int_to_ptr.hbm [resolvable:$true] %s40
      %s42 = sshll.u32 [#allocation5], 4
      %s43 = int_to_ptr.vmem [resolvable:$true] %s42
      %45 = dma.hbm_to_vmem [thread:$0]  %s41, 128, %s43, [#allocation6]
    $region17: #{tpu_custom_call.1} parent=1 // pred_fallthru
      _
    // Predicated region
    $region18: #{tpu_custom_call.1} parent=1 // pred_check
      _
    $region19: #{tpu_custom_call.1} parent=1 // pred_check_branch
      %47 = sbr.rel (0) target = $region21
    $region20: #{tpu_custom_call.1} parent=1 // pred_region
      _
    $region21: #{tpu_custom_call.1} parent=1 // pred_fallthru
      _
    // Predicated region
    $region22: #{tpu_custom_call.1} parent=1 // pred_check
      _
    $region23: #{tpu_custom_call.1} parent=1 // pred_check_branch
      %49 = sbr.rel (0) target = $region25
    $region24: #{tpu_custom_call.1} parent=1 // pred_region
      %51 = vsyncadd [#allocation6], 0
      %s53 = sshll.u32 %s5, 4
      %s54 = int_to_ptr.hbm [resolvable:$true] %s53
      %s55 = sshll.u32 [#allocation7], 4
      %s56 = int_to_ptr.vmem [resolvable:$true] %s55
      %58 = dma.hbm_to_vmem [thread:$0]  %s54, 128, %s56, [#allocation6]
    $region25: #{tpu_custom_call.1} parent=1 // pred_fallthru
      _
    // Predicated region
    $region26: #{tpu_custom_call.1} parent=1 // pred_check
      _
    $region27: #{tpu_custom_call.1} parent=1 // pred_check_branch
      %60 = sbr.rel (0) target = $region29
    $region28: #{tpu_custom_call.1} parent=1 // pred_region
      _
    $region29: #{tpu_custom_call.1} parent=1 // pred_fallthru
      _
    // Predicated region
    $region30: #{tpu_custom_call.1} parent=1 // pred_check
      _
    $region31: #{tpu_custom_call.1} parent=1 // pred_check_branch
      %62 = sbr.rel (0) target = $region33
    $region32: #{tpu_custom_call.1} parent=1 // pred_region
      _
    $region33: #{tpu_custom_call.1} parent=1 // pred_fallthru
      _
    // Predicated region
    $region34: #{tpu_custom_call.1} parent=1 // pred_check
      _
    $region35: #{tpu_custom_call.1} parent=1 // pred_check_branch
      %64 = sbr.rel (0) target = $region37
    $region36: #{tpu_custom_call.1} parent=1 // pred_region
      _
    $region37: #{tpu_custom_call.1} parent=1 // pred_fallthru
      _
    // Predicated region
    $region38: #{tpu_custom_call.1} parent=1 // pred_check
      _
    $region39: #{tpu_custom_call.1} parent=1 // pred_check_branch
      %66 = sbr.rel (0) target = $region41
    $region40: #{tpu_custom_call.1} parent=1 // pred_region
      _
    $region41: #{tpu_custom_call.1} parent=1 // pred_fallthru
      _
    // Predicated region
    $region42: #{tpu_custom_call.1} parent=1 // pred_check
      _
    $region43: #{tpu_custom_call.1} parent=1 // pred_check_branch
      %68 = sbr.rel (0) target = $region45
    $region44: #{tpu_custom_call.1} parent=1 // pred_region
      %70 = dma.done [#allocation3], 256
    $region45: #{tpu_custom_call.1} parent=1 // pred_fallthru
      _
    // Predicated region
    $region46: #{tpu_custom_call.1} parent=1 // pred_check
      _
    $region47: #{tpu_custom_call.1} parent=1 // pred_check_branch
      %72 = sbr.rel (0) target = $region49
    $region48: #{tpu_custom_call.1} parent=1 // pred_region
      %74 = dma.done [#allocation6], 128
    $region49: #{tpu_custom_call.1} parent=1 // pred_fallthru
      _
    // Predicated region
    $region50: #{tpu_custom_call.1} parent=1 // pred_check
      _
    $region51: #{tpu_custom_call.1} parent=1 // pred_check_branch
      %76 = sbr.rel (0) target = $region53
    $region52: #{tpu_custom_call.1} parent=1 // pred_region
      %78 = dma.done [#allocation6], 128
    $region53: #{tpu_custom_call.1} parent=1 // pred_fallthru
      _
    %v79 = vld [vmem:[#allocation2] sm:$0xff]
    %v80 = vld [vmem:[#allocation2 + $0x8] sm:$0xff]
    %v81 = vld [vmem:[%s1] sm:$0xff]
    %v82 = vld [vmem:[%s6] sm:$0x1]
    %v83 = vld [vmem:[%s6 + $0x1] sm:$0x1]
    %v84 = vld [vmem:[%s7] sm:$0x1]
    %v85 = vld [vmem:[%s7 + $0x1] sm:$0x1]
    %v86 = vld [vmem:[%s8] sm:$0x1]
    %v87 = vld [vmem:[%s8 + $0x1] sm:$0x1]
    %vm88 = vcmask 195584
    %v89 = vsel %vm88, %v79, 0.0
    %90 = vadd.xlane.f32.xlu0 %v89
    %v91 = vpop.xlane.xlu0 %90
    %v92 = vsel %vm88, %v80, 0.0
    %93 = vadd.xlane.f32.xlu0 %v92
    %v94 = vpop.xlane.xlu0 %93
    %vm95 = vcmask 64512
    %v96 = vsel %vm95, %v81, 0.0
    %97 = vadd.xlane.f32.xlu0 %v96
    %v98 = vpop.xlane.xlu0 %97
    %v99 = vadd.f32 %v91, %v98
    %v100 = vadd.f32 %v94, %v98
    %v101 = vmul.f32 %v99, 0.03125
    %v102 = vmul.f32 %v100, 0.03125
    %v103 = vsub.f32 %v79, %v101
    %v104 = vsub.f32 %v80, %v102
    %v105 = vsub.f32 %v81, %v101
    %v106 = vsub.f32 %v81, %v102
    %v107 = vmul.f32 %v103, %v103
    %v108 = vmul.f32 %v104, %v104
    %v109 = vsel %vm88, %v107, 0.0
    %110 = vadd.xlane.f32.xlu0 %v109
    %v111 = vpop.xlane.xlu0 %110
    %v112 = vsel %vm88, %v108, 0.0
    %113 = vadd.xlane.f32.xlu0 %v112
    %v114 = vpop.xlane.xlu0 %113
    %v115 = vmul.f32 %v105, %v105
    %v116 = vmul.f32 %v106, %v106
    %v117 = vsel %vm95, %v115, 0.0
    %118 = vadd.xlane.f32.xlu0 %v117
    %v119 = vpop.xlane.xlu0 %118
    %v120 = vsel %vm95, %v116, 0.0
    %121 = vadd.xlane.f32.xlu0 %v120
    %v122 = vpop.xlane.xlu0 %121
    %v123 = vadd.f32 %v111, %v119
    %v124 = vadd.f32 %v114, %v122
    %v125 = vmul.f32 %v123, 0.03125
    %v126 = vmul.f32 %v124, 0.03125
    %v127 = vadd.f32 %v125, 1e-05
    %v128 = vadd.f32 %v126, 1e-05
    %v129 = vrsqrt.pop %v127
    %v130 = vmul.f32 %v129, %v127
    %v131 = vmul.f32 %v130, %v129
    %v132 = vmul.f32 0.5, %v131
    %v133 = vsub.f32 1.5, %v132
    %v134 = vmul.f32 %v129, %v133
    %vm135 = vweird.f32 %v127
    %vm136 = vweird.f32 %v129
    %vm137 = vmor %vm135, %vm136
    %v138 = vsel %vm137, %v129, %v134
    %v139 = vrsqrt.pop %v128
    %v140 = vmul.f32 %v139, %v128
    %v141 = vmul.f32 %v140, %v139
    %v142 = vmul.f32 0.5, %v141
    %v143 = vsub.f32 1.5, %v142
    %v144 = vmul.f32 %v139, %v143
    %vm145 = vweird.f32 %v128
    %vm146 = vweird.f32 %v139
    %vm147 = vmor %vm145, %vm146
    %v148 = vsel %vm147, %v139, %v144
    %v149 = vmul.f32 %v103, %v138
    %v150 = vmul.f32 %v104, %v148
    %v151 = vperm.slane %v82, 0
    %v152 = vmul.f32 %v149, %v151
    %v153 = vmul.f32 %v150, %v151
    %v154 = vperm.slane %v83, 0
    %v155 = vadd.f32 %v152, %v154
    %v156 = vadd.f32 %v153, %v154
    %v157 = vmul.f32 %v105, %v138
    %v158 = vmul.f32 %v106, %v148
    %v159 = vperm.slane %v84, 0
    %v160 = vmul.f32 %v157, %v159
    %v161 = vmul.f32 %v158, %v159
    %v162 = vperm.slane %v85, 0
    %v163 = vadd.f32 %v160, %v162
    %v164 = vadd.f32 %v161, %v162
    %v165 = vld [vmem:[%s2] sm:$0xff]
    %v166 = vld [vmem:[%s2 + $0x8] sm:$0xff]
    %v167 = vld [vmem:[%s2 + $0x10] sm:$0xff]
    %v168 = vld [vmem:[#allocation5] sm:$0xff]
    %v171 = vrot.slane %v164, 7
    %vm172 = vcmask 1041409
    %v173 = vsel %vm172, %v171, %v163
    %v174 = vsel %vm95, %v173, 0
    %176 = vmatpush.msra.mxu0 0.0
    %177 = vmatpush.msra.mxu0 0.0
    %178 = vmatpush.msra.mxu0 0.0
    %179 = vmatpush.msra.mxu0 0.0
    %180 = vmatpush.msra.mxu0 0.0
    %181 = vmatpush.msra.mxu0 0.0
    %182 = vmatpush.msra.mxu0 0.0
    %183 = vmatpush.msra.mxu0 0.0
    %184 = vmatpush.msra.mxu0 0.0
    %185 = vmatpush.msra.mxu0 0.0
    %186 = vmatpush.msra.mxu0 0.0
    %187 = vmatpush.msra.mxu0 0.0
    %188 = vmatpush.msra.mxu0 0.0
    %189 = vmatpush.msra.mxu0 0.0
    %190 = vmatpush.msra.mxu0 0.0
    %191 = vmatpush.msra.mxu0 %v168
    %192 = vmatmul.f32.gmra.mxu0 %v174
    %v193 = vpop.f32.mrf.mxu0
    %v194 = vadd.f32 0.0, %v193
    %195 = vdwg.mxu0
    %v198 = vrot.slane %v156, 7
    %v199 = vsel %vm172, %v198, %v155
    %v200 = vsel %vm88, %v199, 0
    %202 = vmatpush.msra.mxu0 0.0
    %203 = vmatpush.msra.mxu0 0.0
    %204 = vmatpush.msra.mxu0 0.0
    %205 = vmatpush.msra.mxu0 0.0
    %206 = vmatpush.msra.mxu0 0.0
    %207 = vmatpush.msra.mxu0 0.0
    %208 = vmatpush.msra.mxu0 0.0
    %209 = vmatpush.msra.mxu0 0.0
    %210 = vmatpush.msra.mxu0 0.0
    %211 = vmatpush.msra.mxu0 0.0
    %212 = vmatpush.msra.mxu0 0.0
    %213 = vmatpush.msra.mxu0 0.0
    %214 = vmatpush.msra.mxu0 0.0
    %215 = vmatpush.msra.mxu0 %v167
    %216 = vmatpush.msra.mxu0 %v166
    %217 = vmatpush.msra.mxu0 %v165
    %218 = vmatmul.f32.gmra.mxu0 %v200
    %v219 = vpop.f32.mrf.mxu0
    %v220 = vadd.f32 %v194, %v219
    %221 = vdwg.mxu0
    %v222 = vld [vmem:[%s4] sm:$0xff]
    %v223 = vld [vmem:[%s4 + $0x8] sm:$0xff]
    %v224 = vld [vmem:[%s4 + $0x10] sm:$0xff]
    %v225 = vld [vmem:[#allocation7] sm:$0xff]
    %226 = vmatpush.msra.mxu0 0.0
    %227 = vmatpush.msra.mxu0 0.0
    %228 = vmatpush.msra.mxu0 0.0
    %229 = vmatpush.msra.mxu0 0.0
    %230 = vmatpush.msra.mxu0 0.0
    %231 = vmatpush.msra.mxu0 0.0
    %232 = vmatpush.msra.mxu0 0.0
    %233 = vmatpush.msra.mxu0 0.0
    %234 = vmatpush.msra.mxu0 0.0
    %235 = vmatpush.msra.mxu0 0.0
    %236 = vmatpush.msra.mxu0 0.0
    %237 = vmatpush.msra.mxu0 0.0
    %238 = vmatpush.msra.mxu0 0.0
    %239 = vmatpush.msra.mxu0 0.0
    %240 = vmatpush.msra.mxu0 0.0
    %241 = vmatpush.msra.mxu0 %v225
    %242 = vmatmul.f32.gmra.mxu0 %v174
    %v243 = vpop.f32.mrf.mxu0
    %v244 = vadd.f32 0.0, %v243
    %245 = vdwg.mxu0
    %246 = vmatpush.msra.mxu0 0.0
    %247 = vmatpush.msra.mxu0 0.0
    %248 = vmatpush.msra.mxu0 0.0
    %249 = vmatpush.msra.mxu0 0.0
    %250 = vmatpush.msra.mxu0 0.0
    %251 = vmatpush.msra.mxu0 0.0
    %252 = vmatpush.msra.mxu0 0.0
    %253 = vmatpush.msra.mxu0 0.0
    %254 = vmatpush.msra.mxu0 0.0
    %255 = vmatpush.msra.mxu0 0.0
    %256 = vmatpush.msra.mxu0 0.0
    %257 = vmatpush.msra.mxu0 0.0
    %258 = vmatpush.msra.mxu0 0.0
    %259 = vmatpush.msra.mxu0 %v224
    %260 = vmatpush.msra.mxu0 %v223
    %261 = vmatpush.msra.mxu0 %v222
    %262 = vmatmul.f32.gmra.mxu0 %v200
    %v263 = vpop.f32.mrf.mxu0
    %v264 = vadd.f32 %v244, %v263
    %265 = vdwg.mxu0
    %v267 = vrot.slane %v220, 1
    %v268 = vperm.slane %v220, 0
    %v269 = vperm.slane %v267, 0
    %v272 = vmul.f32 %v268, %v155
    %v273 = vmul.f32 %v269, %v156
    %v274 = vsel %vm88, %v272, 0.0
    %275 = vadd.xlane.f32.xlu0 %v274
    %v276 = vpop.xlane.xlu0 %275
    %v277 = vsel %vm88, %v273, 0.0
    %278 = vadd.xlane.f32.xlu0 %v277
    %v279 = vpop.xlane.xlu0 %278
    %v281 = vrot.slane %v264, 1
    %v282 = vperm.slane %v264, 0
    %v283 = vperm.slane %v281, 0
    %v286 = vmul.f32 %v282, %v163
    %v287 = vmul.f32 %v283, %v164
    %v288 = vsel %vm95, %v286, 0.0
    %289 = vadd.xlane.f32.xlu0 %v288
    %v290 = vpop.xlane.xlu0 %289
    %v291 = vsel %vm95, %v287, 0.0
    %292 = vadd.xlane.f32.xlu0 %v291
    %v293 = vpop.xlane.xlu0 %292
    %v294 = vadd.f32 %v276, %v290
    %v295 = vadd.f32 %v279, %v293
    %v296 = vmul.f32 %v294, %v155
    %v297 = vmul.f32 %v295, %v156
    %v298 = vsel %vm88, %v296, 0.0
    %v299 = vrot.slane %v298, 4
    %v300 = vadd.f32 %v298, %v299
    %v301 = vrot.slane %v300, 2
    %v302 = vadd.f32 %v300, %v301
    %v303 = vrot.slane %v302, 1
    %v304 = vadd.f32 %v302, %v303
    %v305 = vsel %vm88, %v297, 0.0
    %v306 = vrot.slane %v305, 4
    %v307 = vadd.f32 %v305, %v306
    %v308 = vrot.slane %v307, 2
    %v309 = vadd.f32 %v307, %v308
    %v310 = vrot.slane %v309, 1
    %v311 = vadd.f32 %v309, %v310
    %v312 = vadd.f32 %v304, %v155
    %v313 = vadd.f32 %v311, %v156
    %v316 = vrot.slane %v313, 7
    %v317 = vsel %vm172, %v316, %v312
    %vm319 = vcmask 189440
    %v320 = vsel %vm319, %v317, 0.0
    %321 = vadd.xlane.f32.xlu0 %v320
    %v322 = vpop.xlane.xlu0 %321
    %v323 = vrcp.pop 24.0
    %v324 = vmul.f32 24.0, %v323
    %v325 = vsub.f32 1.0, %v324
    %v326 = vmul.f32 %v323, %v325
    %v327 = vadd.f32 %v323, %v326
    %vm328 = vweird.f32 %v323
    %v329 = vsel %vm328, %v323, %v327
    %v330 = vmul.f32 %v322, %v329
    %v332 = vrot.slane %v330, 1
    %v335 = vsub.f32 %v312, %v330
    %v336 = vsub.f32 %v313, %v332
    %v337 = vmul.f32 %v335, %v335
    %v338 = vmul.f32 %v336, %v336
    %v341 = vrot.slane %v338, 7
    %v342 = vsel %vm172, %v341, %v337
    %v344 = vsel %vm319, %v342, 0.0
    %345 = vadd.xlane.f32.xlu0 %v344
    %v346 = vpop.xlane.xlu0 %345
    %v347 = vmul.f32 %v346, %v329
    %v348 = vadd.f32 %v347, 1e-05
    %v349 = vrsqrt.pop %v348
    %v350 = vmul.f32 %v349, %v348
    %v351 = vmul.f32 %v350, %v349
    %v352 = vmul.f32 0.5, %v351
    %v353 = vsub.f32 1.5, %v352
    %v354 = vmul.f32 %v349, %v353
    %vm355 = vweird.f32 %v348
    %vm356 = vweird.f32 %v349
    %vm357 = vmor %vm355, %vm356
    %v358 = vsel %vm357, %v349, %v354
    %v360 = vrot.slane %v358, 1
    %v363 = vmul.f32 %v335, %v358
    %v364 = vmul.f32 %v336, %v360
    %v365 = vperm.slane %v86, 0
    %v366 = vmul.f32 %v363, %v365
    %v367 = vmul.f32 %v364, %v365
    %v368 = vperm.slane %v87, 0
    %v369 = vadd.f32 %v366, %v368
    %v370 = vadd.f32 %v367, %v368
    %v371 = vld [vmem:[%s9] sm:$0x1]
    %v374 = vrot.slane %v370, 7
    %v375 = vsel %vm172, %v374, %v369
    %v377 = vsel %vm88, %v371, 0
    %v379 = vsel %vm88, %v375, 0
    %381 = vmatpush.xpose.msra.mxu0 0.0
    %382 = vmatpush.xpose.msra.mxu0 0.0
    %383 = vmatpush.xpose.msra.mxu0 0.0
    %384 = vmatpush.xpose.msra.mxu0 0.0
    %385 = vmatpush.xpose.msra.mxu0 0.0
    %386 = vmatpush.xpose.msra.mxu0 0.0
    %387 = vmatpush.xpose.msra.mxu0 0.0
    %388 = vmatpush.xpose.msra.mxu0 0.0
    %389 = vmatpush.xpose.msra.mxu0 0.0
    %390 = vmatpush.xpose.msra.mxu0 0.0
    %391 = vmatpush.xpose.msra.mxu0 0.0
    %392 = vmatpush.xpose.msra.mxu0 0.0
    %393 = vmatpush.xpose.msra.mxu0 0.0
    %394 = vmatpush.xpose.msra.mxu0 0.0
    %395 = vmatpush.xpose.msra.mxu0 0.0
    %396 = vmatpush.xpose.msra.mxu0 %v379
    %397 = vmatmul.f32.gmra.mxu0 %v377
    %v398 = vpop.f32.mrf.mxu0
    %v399 = vadd.f32 0.0, %v398
    %400 = vdwg.mxu0
    %vm401 = vcmask 8192
    %402 = vst.msk [vmem:[#allocation8] sm:$0x1] %vm401, %v399
    // Predicated region
    $region54: #{tpu_custom_call.1} parent=1 // pred_check
      _
    $region55: #{tpu_custom_call.1} parent=1 // pred_check_branch
      %404 = sbr.rel (0) target = $region57
    $region56: #{tpu_custom_call.1} parent=1 // pred_region
      %406 = vsyncadd [#allocation4], 0
      %s408 = sshll.u32 [#allocation8], 4
      %s409 = int_to_ptr.vmem [resolvable:$true] %s408
      %s410 = sshll.u32 %s10, 4
      %s411 = int_to_ptr.hbm [resolvable:$true] %s410
      %413 = dma.vmem_to_hbm [thread:$0]  %s409, 16, %s411, [#allocation4]
    $region57: #{tpu_custom_call.1} parent=1 // pred_fallthru
      _
    // Predicated region
    $region58: #{tpu_custom_call.1} parent=1 // pred_check
      _
    $region59: #{tpu_custom_call.1} parent=1 // pred_check_branch
      %415 = sbr.rel (0) target = $region61
    $region60: #{tpu_custom_call.1} parent=1 // pred_region
      %417 = dma.done [#allocation4], 16
    $region61: #{tpu_custom_call.1} parent=1 // pred_fallthru
      _
    %418 = vsyncpa [#allocation3], 1
    %419 = vsyncpa [#allocation6], 1
    %420 = vsyncpa [#allocation4], 1

</llo_original>
